<compile_context>
chip_gen: v5e
topology: v5e:2x2
jax: 0.10.0
libtpu: 0.0.40
codegen_flags: <defaults>
</compile_context>

<pallas_src>
import functools

import jax
import jax.numpy as jnp
from jax import lax
from jax.experimental import pallas as pl
from jax.experimental.pallas import tpu as pltpu


def _round_up(x, m):
    return ((x + m - 1) // m) * m


# ----------------------------- shared step body ------------------------------
def _lstm_stack_step(ids_col, state, emb_ref, layer_refs, fc_w_ref, fc_b_ref,
                     *, n_layers, hid_dim, batch, vocab_padded):
    """One decode step on VMEM-resident operands.

    ids_col : int32 [B, 1]      token ids (column vector)
    state   : f32   [B, L*2*H]  packed (h_l, c_l) per layer
    returns (padded logits f32 [B, P], new packed state f32 [B, L*2*H]).
    """
    B, H, Vp = batch, hid_dim, vocab_padded

    # Fused embedding gather: one-hot via a single vector compare, then a tiny
    # bf16 MXU matmul against the (padded) embedding table.
    iota = lax.broadcasted_iota(jnp.int32, (B, Vp), 1)
    onehot = (iota == ids_col).astype(jnp.bfloat16)                 # [B, Vp]
    layer_in = jnp.dot(onehot, emb_ref[...],
                       preferred_element_type=jnp.float32)          # [B, E] f32

    new_chunks = []
    for l in range(n_layers):
        w_ref, b_ref = layer_refs[l]
        h_prev = state[:, l * 2 * H: l * 2 * H + H]                  # [B, H]
        c_prev = state[:, l * 2 * H + H: (l + 1) * 2 * H]            # [B, H]

        # single fused matmul: [x | h] @ [W_ih.T ; W_hh.T]  (bf16 MXU, f32 acc)
        zh = jnp.concatenate([layer_in, h_prev], axis=1).astype(jnp.bfloat16)
        gates = (jnp.dot(zh, w_ref[...], preferred_element_type=jnp.float32)
                 + b_ref[...])                                       # [B, 4H]

        # full-vreg activations (f32), then 32-lane slices for the combine
        sig = jax.nn.sigmoid(gates)
        th = jnp.tanh(gates)
        i_g = sig[:, 0:H]
        f_g = sig[:, H:2 * H]
        g_g = th[:, 2 * H:3 * H]
        o_g = sig[:, 3 * H:4 * H]

        c_new = f_g * c_prev + i_g * g_g
        h_new = o_g * jnp.tanh(c_new)
        new_chunks += [h_new, c_new]
        layer_in = h_new

    new_state = jnp.concatenate(new_chunks, axis=1)                  # [B, L2H]
    logits = (jnp.dot(layer_in.astype(jnp.bfloat16), fc_w_ref[...],
                      preferred_element_type=jnp.float32)
              + fc_b_ref[...])                                       # [B, P]
    return logits, new_state


# ------------------------------ kernel factories ------------------------------
def make_step_kernel(n_layers, hid_dim, batch, vocab_padded):
    """Grid-less single decode step (module-compatible forward)."""
    def kernel(*refs):
        ids_ref, state_ref, emb_ref = refs[0], refs[1], refs[2]
        base = 3
        layer_refs = [(refs[base + 2 * l], refs[base + 2 * l + 1])
                      for l in range(n_layers)]
        fc_w_ref, fc_b_ref = refs[base + 2 * n_layers], refs[base + 2 * n_layers + 1]
        pred_ref, state_out_ref = refs[-2], refs[-1]

        logits, new_state = _lstm_stack_step(
            ids_ref[...], state_ref[...], emb_ref, layer_refs, fc_w_ref,
            fc_b_ref, n_layers=n_layers, hid_dim=hid_dim, batch=batch,
            vocab_padded=vocab_padded)
        state_out_ref[...] = new_state
        pred_ref[...] = logits
    return kernel


def make_fused_kernel(n_layers, hid_dim, batch, vocab_padded):
    """T-step teacher-forced decode: grid=(T,), weights VMEM-resident,
    recurrent state kept in the constant-index output block."""
    def kernel(*refs):
        ids_ref, state0_ref, emb_ref = refs[0], refs[1], refs[2]
        base = 3
        layer_refs = [(refs[base + 2 * l], refs[base + 2 * l + 1])
                      for l in range(n_layers)]
        fc_w_ref, fc_b_ref = refs[base + 2 * n_layers], refs[base + 2 * n_layers + 1]
        logits_ref, state_out_ref = refs[-2], refs[-1]

        t = pl.program_id(0)

        @pl.when(t == 0)
        def _():
            state_out_ref[...] = state0_ref[...]

        logits, new_state = _lstm_stack_step(
            ids_ref[0], state_out_ref[...], emb_ref, layer_refs, fc_w_ref,
            fc_b_ref, n_layers=n_layers, hid_dim=hid_dim, batch=batch,
            vocab_padded=vocab_padded)
        state_out_ref[...] = new_state
        logits_ref[0] = logits
    return kernel


# ----------------------- one-time parameter preparation -----------------------
def prepare_params(params, n_layers, batch, lane=128):
    """Transpose/fold/pad/cast weights ONCE, outside the decode path."""
    emb = params["embedding"]
    V, E = emb.shape
    Vp = _round_up(V, 16)                         # bf16 sublane-tile friendly
    prepared = {
        "embedding": jnp.pad(emb, ((0, Vp - V), (0, 0))).astype(jnp.bfloat16)
    }
    H = params["w_hh_0"].shape[1]
    for l in range(n_layers):
        w = jnp.concatenate([params[f"w_ih_{l}"], params[f"w_hh_{l}"]],
                            axis=1).T.astype(jnp.bfloat16)        # [in+H, 4H]
        b = (params[f"b_ih_{l}"] + params[f"b_hh_{l}"]).astype(jnp.float32)
        prepared[f"w_{l}"] = w
        prepared[f"b_{l}"] = jnp.broadcast_to(b[None, :], (batch, 4 * H)) + 0.0
    out_dim = params["fc_w"].shape[0]
    P = _round_up(out_dim, lane)
    fc_w_t = jnp.pad(params["fc_w"].T,
                     ((0, 0), (0, P - out_dim))).astype(jnp.bfloat16)  # [H, P]
    # pad logits lanes with -1e9 so a padded lane can never win argmax/softmax
    fc_b = jnp.concatenate(
        [params["fc_b"].astype(jnp.float32),
         jnp.full((P - out_dim,), -1e9, jnp.float32)])
    prepared["fc_w_t"] = fc_w_t
    prepared["fc_b"] = jnp.broadcast_to(fc_b[None, :], (batch, P)) + 0.0
    return prepared


def pack_state(hidden, cell):
    """[L,B,H] x2 -> lane-dense [B, L*2*H] with per-layer (h_l, c_l) layout."""
    L, B, H = hidden.shape
    hc = jnp.concatenate([hidden, cell], axis=-1)          # [L, B, 2H]
    return jnp.transpose(hc, (1, 0, 2)).reshape(B, L * 2 * H)


def unpack_state(state, n_layers, hid_dim):
    B = state.shape[0]
    hc = state.reshape(B, n_layers, 2 * hid_dim).transpose(1, 0, 2)  # [L,B,2H]
    return hc[..., :hid_dim], hc[..., hid_dim:]


# ------------------------------- single step call -----------------------------
@functools.partial(jax.jit, static_argnames=("n_layers", "output_dim"))
def decoder_step(input_ids, state, prepared, *, n_layers, output_dim):
    B = input_ids.shape[0]
    emb = prepared["embedding"]
    Vp, E = emb.shape
    H = prepared["w_0"].shape[1] // 4
    P = prepared["fc_w_t"].shape[1]
    W = state.shape[1]

    ids_col = input_ids.astype(jnp.int32).reshape(B, 1)
    inputs = [ids_col, state, emb]
    for l in range(n_layers):
        inputs += [prepared[f"w_{l}"], prepared[f"b_{l}"]]
    inputs += [prepared["fc_w_t"], prepared["fc_b"]]

    vmem = pl.BlockSpec(memory_space=pltpu.MemorySpace.VMEM)
    pred_padded, new_state = pl.pallas_call(
        make_step_kernel(n_layers, H, B, Vp),
        out_shape=(jax.ShapeDtypeStruct((B, P), jnp.float32),
                   jax.ShapeDtypeStruct((B, W), jnp.float32)),
        in_specs=[vmem for _ in inputs],
        out_specs=(vmem, vmem),
        input_output_aliases={1: 1},    # packed state in -> packed state out
    )(*inputs)
    # module contract requires [B, output_dim]; the fused path defers this slice
    return pred_padded[:, :output_dim], new_state


def decoder_forward(input_ids, hidden, cell, prepared, *, n_layers, output_dim):
    """Interface-compatible with Decoder.forward (hidden/cell as [L,B,H])."""
    hid_dim = hidden.shape[-1]
    state = pack_state(hidden, cell)
    pred, new_state = decoder_step(input_ids, state, prepared,
                                   n_layers=n_layers, output_dim=output_dim)
    h_new, c_new = unpack_state(new_state, n_layers, hid_dim)
    return pred, h_new, c_new


# ---------------------- fused T-step (teacher-forced) decode ------------------
@functools.partial(jax.jit, static_argnames=("n_layers", "output_dim"))
def decoder_decode_fused(tokens, state, prepared, *, n_layers, output_dim):
    """Run T decode steps in ONE pallas_call (weights resident in VMEM,
    recurrent state never leaves VMEM between steps)."""
    T, B = tokens.shape
    emb = prepared["embedding"]
    Vp, E = emb.shape
    H = prepared["w_0"].shape[1] // 4
    P = prepared["fc_w_t"].shape[1]
    W = state.shape[1]

    ids_col = tokens.astype(jnp.int32).reshape(T, B, 1)
    inputs = [ids_col, state, emb]
    in_specs = [
        pl.BlockSpec((1, B, 1), lambda t: (t, 0, 0)),      # per-step token ids
        pl.BlockSpec((B, W), lambda t: (0, 0)),            # initial state
        pl.BlockSpec((Vp, E), lambda t: (0, 0)),           # embedding (resident)
    ]
    for l in range(n_layers):
        w = prepared[f"w_{l}"]
        inputs += [w, prepared[f"b_{l}"]]
        in_specs += [pl.BlockSpec(w.shape, lambda t: (0, 0)),
                     pl.BlockSpec((B, 4 * H), lambda t: (0, 0))]
    inputs += [prepared["fc_w_t"], prepared["fc_b"]]
    in_specs += [pl.BlockSpec((H, P), lambda t: (0, 0)),
                 pl.BlockSpec((B, P), lambda t: (0, 0))]

    out_shapes = (jax.ShapeDtypeStruct((T, B, P), jnp.float32),
                  jax.ShapeDtypeStruct((B, W), jnp.float32))
    out_specs = (pl.BlockSpec((1, B, P), lambda t: (t, 0, 0)),
                 pl.BlockSpec((B, W), lambda t: (0, 0)))   # resident state acc

    logits_padded, final_state = pl.pallas_call(
        make_fused_kernel(n_layers, H, B, Vp),
        grid=(T,),
        out_shape=out_shapes,
        in_specs=in_specs,
        out_specs=out_specs,
        input_output_aliases={1: 1},
        compiler_params=pltpu.CompilerParams(
            dimension_semantics=("arbitrary",)),
    )(*inputs)
    # single slice per sequence (not per step)
    return logits_padded[..., :output_dim], final_state


def decoder_teacher_forced_rollout(tokens, hidden, cell, prepared, *,
                                   n_layers, output_dim):
    hid_dim = hidden.shape[-1]
    state = pack_state(hidden, cell)
    logits, final_state = decoder_decode_fused(
        tokens, state, prepared, n_layers=n_layers, output_dim=output_dim)
    h_new, c_new = unpack_state(final_state, n_layers, hid_dim)
    return logits, h_new, c_new


# --------------------------------- reference ----------------------------------
def reference_forward(input_ids, hidden, cell, params, n_layers):
    x = jnp.take(params["embedding"], input_ids, axis=0)
    H = hidden.shape[-1]
    h_out, c_out = [], []
    for l in range(n_layers):
        h_prev, c_prev = hidden[l], cell[l]
        gates = (x @ params[f"w_ih_{l}"].T + h_prev @ params[f"w_hh_{l}"].T
                 + params[f"b_ih_{l}"] + params[f"b_hh_{l}"])
        i = jax.nn.sigmoid(gates[:, :H])
        f = jax.nn.sigmoid(gates[:, H:2 * H])
        g = jnp.tanh(gates[:, 2 * H:3 * H])
        o = jax.nn.sigmoid(gates[:, 3 * H:4 * H])
        c_new = f * c_prev + i * g
        h_new = o * jnp.tanh(c_new)
        h_out.append(h_new)
        c_out.append(c_new)
        x = h_new
    pred = x @ params["fc_w"].T + params["fc_b"]
    return pred, jnp.stack(h_out), jnp.stack(c_out)


def init_params(key, vocab_size, emb_dim, hid_dim, n_layers, output_dim):
    params = {}
    k = key

    def nxt():
        nonlocal k
        k, sub = jax.random.split(k)
        return sub

    emb = jax.random.normal(nxt(), (vocab_size, emb_dim), jnp.float32) * 0.1
    emb = emb.at[0].set(0.0)  # padding_idx=0
    params["embedding"] = emb

    s = 1.0 / float(jnp.sqrt(hid_dim))
    for l in range(n_layers):
        in_dim = emb_dim if l == 0 else hid_dim
        params[f"w_ih_{l}"] = jax.random.uniform(
            nxt(), (4 * hid_dim, in_dim), jnp.float32, -s, s)
        params[f"w_hh_{l}"] = jax.random.uniform(
            nxt(), (4 * hid_dim, hid_dim), jnp.float32, -s, s)
        params[f"b_ih_{l}"] = jax.random.uniform(
            nxt(), (4 * hid_dim,), jnp.float32, -s, s)
        params[f"b_hh_{l}"] = jax.random.uniform(
            nxt(), (4 * hid_dim,), jnp.float32, -s, s)

    params["fc_w"] = jax.random.uniform(
        nxt(), (output_dim, hid_dim), jnp.float32, -s, s)
    params["fc_b"] = jax.random.uniform(
        nxt(), (output_dim,), jnp.float32, -s, s)
    return params


if __name__ == "__main__":
    vocab_size = 20          # output_dim == vocab size for a decoder
    emb_dim = 32
    hid_dim = 32
    n_layers = 2
    output_dim = vocab_size
    batch = 8
    T = 6                    # teacher-forced decode length for the fused path

    key = jax.random.PRNGKey(0)
    k_param, k_in, k_h, k_c, k_tok = jax.random.split(key, 5)

    params = init_params(k_param, vocab_size, emb_dim, hid_dim, n_layers,
                         output_dim)
    prepared = prepare_params(params, n_layers, batch)  # one-time prep

    input_ids = jax.random.randint(k_in, (batch,), 1, vocab_size,
                                   dtype=jnp.int32)
    hidden = jax.random.normal(k_h, (n_layers, batch, hid_dim), jnp.float32)
    cell = jax.random.normal(k_c, (n_layers, batch, hid_dim), jnp.float32)

    # ---------------- single step (module-compatible forward) ----------------
    pred, h_new, c_new = decoder_forward(
        input_ids, hidden, cell, prepared,
        n_layers=n_layers, output_dim=output_dim)
    jax.block_until_ready((pred, h_new, c_new))

    assert pred.shape == (batch, output_dim)
    assert h_new.shape == (n_layers, batch, hid_dim)
    assert c_new.shape == (n_layers, batch, hid_dim)

    pred_r, h_r, c_r = reference_forward(input_ids, hidden, cell, params,
                                         n_layers)
    # bf16 weights -> tolerance loosened from 1e-4 (per review)
    err1 = max(float(jnp.max(jnp.abs(pred - pred_r))),
               float(jnp.max(jnp.abs(h_new - h_r))),
               float(jnp.max(jnp.abs(c_new - c_r))))
    assert err1 < 5e-2, f"single-step mismatch vs reference: {err1}"

    # ------------- fused T-step teacher-forced decode (grid=(T,)) -------------
    tokens = jax.random.randint(k_tok, (T, batch), 1, vocab_size,
                                dtype=jnp.int32)
    logits, h_T, c_T = decoder_teacher_forced_rollout(
        tokens, hidden, cell, prepared,
        n_layers=n_layers, output_dim=output_dim)
    jax.block_until_ready((logits, h_T, c_T))

    assert logits.shape == (T, batch, output_dim)

    h_ref, c_ref = hidden, cell
    ref_logits = []
    for t in range(T):
        p_t, h_ref, c_ref = reference_forward(tokens[t], h_ref, c_ref, params,
                                              n_layers)
        ref_logits.append(p_t)
    ref_logits = jnp.stack(ref_logits)
    err2 = max(float(jnp.max(jnp.abs(logits - ref_logits))),
               float(jnp.max(jnp.abs(h_T - h_ref))),
               float(jnp.max(jnp.abs(c_T - c_ref))))
    assert err2 < 5e-2, f"fused-loop mismatch vs reference: {err2}"

    print("KERNEL_OK")
</pallas_src>

<mosaic_0001>
module attributes {stable_mosaic.version = 11 : i64} {
  func.func @kernel(%arg0: memref<8x1xi32, #tpu.memory_space<vmem>>, %arg1: memref<8x128xf32, #tpu.memory_space<vmem>>, %arg2: memref<32x32xbf16, #tpu.memory_space<vmem>>, %arg3: memref<64x128xbf16, #tpu.memory_space<vmem>>, %arg4: memref<8x128xf32, #tpu.memory_space<vmem>>, %arg5: memref<64x128xbf16, #tpu.memory_space<vmem>>, %arg6: memref<8x128xf32, #tpu.memory_space<vmem>>, %arg7: memref<32x128xbf16, #tpu.memory_space<vmem>>, %arg8: memref<8x128xf32, #tpu.memory_space<vmem>>, %arg9: memref<8x128xf32, #tpu.memory_space<vmem>>, %arg10: memref<8x128xf32, #tpu.memory_space<vmem>>) attributes {dimension_semantics = [], scalar_prefetch = 0 : i64, scratch_operands = 0 : i64, tpu.core_type = #tpu.core_type<tc>} {
    %c0 = arith.constant 0 : index
    %c0_0 = arith.constant 0 : index
    %0 = vector.load %arg0[%c0, %c0_0] : memref<8x1xi32, #tpu.memory_space<vmem>>, vector<8x1xi32>
    %c0_1 = arith.constant 0 : index
    %c0_2 = arith.constant 0 : index
    %1 = vector.load %arg1[%c0_1, %c0_2] : memref<8x128xf32, #tpu.memory_space<vmem>>, vector<8x128xf32>
    %2 = tpu.iota {dimensions = array<i32: 1>} : vector<8x32xi32>
    %3 = vector.broadcast %0 : vector<8x1xi32> to vector<8x32xi32>
    %4 = arith.cmpi eq, %2, %3 : vector<8x32xi32>
    %5 = arith.extui %4 : vector<8x32xi1> to vector<8x32xi32>
    %6 = arith.sitofp %5 : vector<8x32xi32> to vector<8x32xf32>
    %7 = arith.truncf %6 : vector<8x32xf32> to vector<8x32xbf16>
    %c0_3 = arith.constant 0 : index
    %c0_4 = arith.constant 0 : index
    %8 = vector.load %arg2[%c0_3, %c0_4] : memref<32x32xbf16, #tpu.memory_space<vmem>>, vector<32x32xbf16>
    %cst = arith.constant dense<0.000000e+00> : vector<8x32xf32>
    %9 = tpu.matmul %7, %8, %cst {dimension_numbers = #tpu.dot_dimension_numbers<[1], [0], [0], [1], [0, 0, 1, 1], [], []>} : vector<8x32xbf16>, vector<32x32xbf16>, vector<8x32xf32> -> vector<8x32xf32>
    %10 = vector.extract_strided_slice %1 {offsets = [0, 0], sizes = [8, 32], strides = [1, 1]} : vector<8x128xf32> to vector<8x32xf32>
    %11 = vector.extract_strided_slice %1 {offsets = [0, 32], sizes = [8, 32], strides = [1, 1]} : vector<8x128xf32> to vector<8x32xf32>
    %12 = tpu.concatenate %9, %10 in 1 : vector<8x32xf32>, vector<8x32xf32> -> vector<8x64xf32>
    %13 = arith.truncf %12 : vector<8x64xf32> to vector<8x64xbf16>
    %c0_5 = arith.constant 0 : index
    %c0_6 = arith.constant 0 : index
    %14 = vector.load %arg3[%c0_5, %c0_6] : memref<64x128xbf16, #tpu.memory_space<vmem>>, vector<64x128xbf16>
    %cst_7 = arith.constant dense<0.000000e+00> : vector<8x128xf32>
    %15 = tpu.matmul %13, %14, %cst_7 {dimension_numbers = #tpu.dot_dimension_numbers<[1], [0], [0], [1], [0, 0, 1, 1], [], []>} : vector<8x64xbf16>, vector<64x128xbf16>, vector<8x128xf32> -> vector<8x128xf32>
    %c0_8 = arith.constant 0 : index
    %c0_9 = arith.constant 0 : index
    %16 = vector.load %arg4[%c0_8, %c0_9] : memref<8x128xf32, #tpu.memory_space<vmem>>, vector<8x128xf32>
    %17 = arith.addf %15, %16 : vector<8x128xf32>
    %18 = arith.negf %17 : vector<8x128xf32>
    %19 = math.exp %18 : vector<8x128xf32>
    %cst_10 = arith.constant 1.000000e+00 : f32
    %20 = vector.broadcast %cst_10 : f32 to vector<8x128xf32>
    %21 = arith.addf %20, %19 : vector<8x128xf32>
    %22 = arith.divf %20, %21 : vector<8x128xf32>
    %23 = math.tanh %17 : vector<8x128xf32>
    %24 = vector.extract_strided_slice %22 {offsets = [0, 0], sizes = [8, 32], strides = [1, 1]} : vector<8x128xf32> to vector<8x32xf32>
    %25 = vector.extract_strided_slice %22 {offsets = [0, 32], sizes = [8, 32], strides = [1, 1]} : vector<8x128xf32> to vector<8x32xf32>
    %26 = vector.extract_strided_slice %23 {offsets = [0, 64], sizes = [8, 32], strides = [1, 1]} : vector<8x128xf32> to vector<8x32xf32>
    %27 = vector.extract_strided_slice %22 {offsets = [0, 96], sizes = [8, 32], strides = [1, 1]} : vector<8x128xf32> to vector<8x32xf32>
    %28 = arith.mulf %25, %11 : vector<8x32xf32>
    %29 = arith.mulf %24, %26 : vector<8x32xf32>
    %30 = arith.addf %28, %29 : vector<8x32xf32>
    %31 = math.tanh %30 : vector<8x32xf32>
    %32 = arith.mulf %27, %31 : vector<8x32xf32>
    %33 = vector.extract_strided_slice %1 {offsets = [0, 64], sizes = [8, 32], strides = [1, 1]} : vector<8x128xf32> to vector<8x32xf32>
    %34 = vector.extract_strided_slice %1 {offsets = [0, 96], sizes = [8, 32], strides = [1, 1]} : vector<8x128xf32> to vector<8x32xf32>
    %35 = tpu.concatenate %32, %33 in 1 : vector<8x32xf32>, vector<8x32xf32> -> vector<8x64xf32>
    %36 = arith.truncf %35 : vector<8x64xf32> to vector<8x64xbf16>
    %c0_11 = arith.constant 0 : index
    %c0_12 = arith.constant 0 : index
    %37 = vector.load %arg5[%c0_11, %c0_12] : memref<64x128xbf16, #tpu.memory_space<vmem>>, vector<64x128xbf16>
    %cst_13 = arith.constant dense<0.000000e+00> : vector<8x128xf32>
    %38 = tpu.matmul %36, %37, %cst_13 {dimension_numbers = #tpu.dot_dimension_numbers<[1], [0], [0], [1], [0, 0, 1, 1], [], []>} : vector<8x64xbf16>, vector<64x128xbf16>, vector<8x128xf32> -> vector<8x128xf32>
    %c0_14 = arith.constant 0 : index
    %c0_15 = arith.constant 0 : index
    %39 = vector.load %arg6[%c0_14, %c0_15] : memref<8x128xf32, #tpu.memory_space<vmem>>, vector<8x128xf32>
    %40 = arith.addf %38, %39 : vector<8x128xf32>
    %41 = arith.negf %40 : vector<8x128xf32>
    %42 = math.exp %41 : vector<8x128xf32>
    %cst_16 = arith.constant 1.000000e+00 : f32
    %43 = vector.broadcast %cst_16 : f32 to vector<8x128xf32>
    %44 = arith.addf %43, %42 : vector<8x128xf32>
    %45 = arith.divf %43, %44 : vector<8x128xf32>
    %46 = math.tanh %40 : vector<8x128xf32>
    %47 = vector.extract_strided_slice %45 {offsets = [0, 0], sizes = [8, 32], strides = [1, 1]} : vector<8x128xf32> to vector<8x32xf32>
    %48 = vector.extract_strided_slice %45 {offsets = [0, 32], sizes = [8, 32], strides = [1, 1]} : vector<8x128xf32> to vector<8x32xf32>
    %49 = vector.extract_strided_slice %46 {offsets = [0, 64], sizes = [8, 32], strides = [1, 1]} : vector<8x128xf32> to vector<8x32xf32>
    %50 = vector.extract_strided_slice %45 {offsets = [0, 96], sizes = [8, 32], strides = [1, 1]} : vector<8x128xf32> to vector<8x32xf32>
    %51 = arith.mulf %48, %34 : vector<8x32xf32>
    %52 = arith.mulf %47, %49 : vector<8x32xf32>
    %53 = arith.addf %51, %52 : vector<8x32xf32>
    %54 = math.tanh %53 : vector<8x32xf32>
    %55 = arith.mulf %50, %54 : vector<8x32xf32>
    %56 = tpu.concatenate %32, %30, %55, %53 in 1 : vector<8x32xf32>, vector<8x32xf32>, vector<8x32xf32>, vector<8x32xf32> -> vector<8x128xf32>
    %57 = arith.truncf %55 : vector<8x32xf32> to vector<8x32xbf16>
    %c0_17 = arith.constant 0 : index
    %c0_18 = arith.constant 0 : index
    %58 = vector.load %arg7[%c0_17, %c0_18] : memref<32x128xbf16, #tpu.memory_space<vmem>>, vector<32x128xbf16>
    %cst_19 = arith.constant dense<0.000000e+00> : vector<8x128xf32>
    %59 = tpu.matmul %57, %58, %cst_19 {dimension_numbers = #tpu.dot_dimension_numbers<[1], [0], [0], [1], [0, 0, 1, 1], [], []>} : vector<8x32xbf16>, vector<32x128xbf16>, vector<8x128xf32> -> vector<8x128xf32>
    %c0_20 = arith.constant 0 : index
    %c0_21 = arith.constant 0 : index
    %60 = vector.load %arg8[%c0_20, %c0_21] : memref<8x128xf32, #tpu.memory_space<vmem>>, vector<8x128xf32>
    %61 = arith.addf %59, %60 : vector<8x128xf32>
    %c0_22 = arith.constant 0 : index
    %c0_23 = arith.constant 0 : index
    %62 = vector.load %arg10[%c0_22, %c0_23] : memref<8x128xf32, #tpu.memory_space<vmem>>, vector<8x128xf32>
    tpu.vector_store %arg10[%c0_22, %c0_23], %56 {strides = array<i32>} : memref<8x128xf32, #tpu.memory_space<vmem>>, vector<8x128xf32>,
    %c0_24 = arith.constant 0 : index
    %c0_25 = arith.constant 0 : index
    %63 = vector.load %arg9[%c0_24, %c0_25] : memref<8x128xf32, #tpu.memory_space<vmem>>, vector<8x128xf32>
    tpu.vector_store %arg9[%c0_24, %c0_25], %61 {strides = array<i32>} : memref<8x128xf32, #tpu.memory_space<vmem>>, vector<8x128xf32>,
    return
  }
}

</mosaic_0001>

<llo_original>
// kernel: decoder_step.1
$region0: #{decoder_step.1}
  #allocation0 [shape = 'u32[]', space=smem, size = 0x4, offset = 0x4, fixed_abs, tag = 'smem constant byte address 0x4 - core index']
  #allocation1 [shape = 'u32[72,128]{1,0:T(1,128)}', space=vmem, size = 0x9000, scoped, tag = 'internal scratch']
  %s0 = inlined_call_operand.vmem [shape: s32[8,1], index: 0, kind: input, shape index: {}]
  %s1 = inlined_call_operand.vmem [shape: f32[8,128], index: 1, kind: input, shape index: {}, may-alias: {1,10}]
  %s2 = inlined_call_operand.vmem [shape: bf16[32,32], index: 2, kind: input, shape index: {}]
  %s3 = inlined_call_operand.hbm [shape: bf16[64,128], index: 3, kind: input, shape index: {}]
  %s4 = inlined_call_operand.hbm [shape: f32[8,128], index: 4, kind: input, shape index: {}]
  %s5 = inlined_call_operand.hbm [shape: bf16[64,128], index: 5, kind: input, shape index: {}]
  %s6 = inlined_call_operand.hbm [shape: f32[8,128], index: 6, kind: input, shape index: {}]
  %s7 = inlined_call_operand.hbm [shape: bf16[32,128], index: 7, kind: input, shape index: {}]
  %s8 = inlined_call_operand.hbm [shape: f32[8,128], index: 8, kind: input, shape index: {}]
  %s9 = inlined_call_operand.hbm [shape: f32[8,128], index: 9, kind: output, shape index: {0}]
  %s10 = inlined_call_operand.vmem [shape: f32[8,128], index: 10, kind: output, shape index: {1}, may-alias: {1,10}]
  %11 = xla_tuple %s9, %s10
  %s12 = sld [smem:[#allocation0]]
  $region78: #{decoder_step.1} parent=0
    _
  %s14 = ssub.s32 1, %s12
  %s15 = scalar_select 0, %s14, %s12
  $region1: #{decoder_step.1} parent=0
    #allocation2 [shape = 'u8[16384]{0}', space=vmem, size = 0x4000, scoped, tag = 'input window, operand 3, single buffered']
    #allocation3 [shape = 's32[1]{0}', space=sflag, size = 0x4, scoped, tag = 'scoped memory for decoder_step.1']
    #allocation4 [shape = 's32[1]{0}', space=sflag, size = 0x4, scoped, tag = 'scoped memory for decoder_step.1']
    #allocation5 [shape = 'u8[4096]{0}', space=vmem, size = 0x1000, scoped, tag = 'input window, operand 4, single buffered']
    #allocation6 [shape = 's32[1]{0}', space=sflag, size = 0x4, scoped, tag = 'scoped memory for decoder_step.1']
    #allocation7 [shape = 'u8[16384]{0}', space=vmem, size = 0x4000, scoped, tag = 'input window, operand 5, single buffered']
    #allocation8 [shape = 'u8[4096]{0}', space=vmem, size = 0x1000, scoped, tag = 'input window, operand 6, single buffered']
    #allocation9 [shape = 's32[1]{0}', space=sflag, size = 0x4, scoped, tag = 'scoped memory for decoder_step.1']
    #allocation10 [shape = 'u8[8192]{0}', space=vmem, size = 0x2000, scoped, tag = 'input window, operand 7, single buffered']
    #allocation11 [shape = 'u8[4096]{0}', space=vmem, size = 0x1000, scoped, tag = 'input window, operand 8, single buffered']
    #allocation12 [shape = 's32[1]{0}', space=sflag, size = 0x4, scoped, tag = 'scoped memory for decoder_step.1']
    #allocation13 [shape = 'u8[4096]{0}', space=vmem, size = 0x1000, scoped, tag = 'output window, operand 0, single buffered']
    %16 = vsyncpa [#allocation3], 0
    %17 = vsyncpa [#allocation6], 0
    %18 = vsyncpa [#allocation9], 0
    %19 = vsyncpa [#allocation12], 0
    %20 = vsyncpa [#allocation4], 0
    // Predicated region
    $region2: #{decoder_step.1} parent=1 // pred_check
      _
    $region3: #{decoder_step.1} parent=1 // pred_check_branch
      %22 = sbr.rel (0) target = $region5
    $region4: #{decoder_step.1} parent=1 // pred_region
      _
    $region5: #{decoder_step.1} parent=1 // pred_fallthru
      _
    // Predicated region
    $region6: #{decoder_step.1} parent=1 // pred_check
      _
    $region7: #{decoder_step.1} parent=1 // pred_check_branch
      %24 = sbr.rel (0) target = $region9
    $region8: #{decoder_step.1} parent=1 // pred_region
      _
    $region9: #{decoder_step.1} parent=1 // pred_fallthru
      _
    // Predicated region
    $region10: #{decoder_step.1} parent=1 // pred_check
      _
    $region11: #{decoder_step.1} parent=1 // pred_check_branch
      %26 = sbr.rel (0) target = $region13
    $region12: #{decoder_step.1} parent=1 // pred_region
      _
    $region13: #{decoder_step.1} parent=1 // pred_fallthru
      _
    // Predicated region
    $region14: #{decoder_step.1} parent=1 // pred_check
      _
    $region15: #{decoder_step.1} parent=1 // pred_check_branch
      %28 = sbr.rel (0) target = $region17
    $region16: #{decoder_step.1} parent=1 // pred_region
      %30 = vsyncadd [#allocation3], 0
      %s31 = sshll.u32 %s3, 4
      %s32 = int_to_ptr.hbm [resolvable:$true] %s31
      %s33 = sshll.u32 [#allocation2], 4
      %s34 = int_to_ptr.vmem [resolvable:$true] %s33
      %39 = dma.hbm_to_vmem [thread:$0]  %s32, 512, %s34, [#allocation3], 64, 64, 4
    $region17: #{decoder_step.1} parent=1 // pred_fallthru
      _
    // Predicated region
    $region18: #{decoder_step.1} parent=1 // pred_check
      _
    $region19: #{decoder_step.1} parent=1 // pred_check_branch
      %41 = sbr.rel (0) target = $region21
    $region20: #{decoder_step.1} parent=1 // pred_region
      %43 = vsyncadd [#allocation6], 0
      %s45 = sshll.u32 %s4, 4
      %s46 = int_to_ptr.hbm [resolvable:$true] %s45
      %s47 = sshll.u32 [#allocation5], 4
      %s48 = int_to_ptr.vmem [resolvable:$true] %s47
      %50 = dma.hbm_to_vmem [thread:$0]  %s46, 128, %s48, [#allocation6]
    $region21: #{decoder_step.1} parent=1 // pred_fallthru
      _
    // Predicated region
    $region22: #{decoder_step.1} parent=1 // pred_check
      _
    $region23: #{decoder_step.1} parent=1 // pred_check_branch
      %52 = sbr.rel (0) target = $region25
    $region24: #{decoder_step.1} parent=1 // pred_region
      %54 = vsyncadd [#allocation6], 0
      %s55 = sshll.u32 %s5, 4
      %s56 = int_to_ptr.hbm [resolvable:$true] %s55
      %s57 = sshll.u32 [#allocation7], 4
      %s58 = int_to_ptr.vmem [resolvable:$true] %s57
      %63 = dma.hbm_to_vmem [thread:$0]  %s56, 512, %s58, [#allocation6], 64, 64, 4
    $region25: #{decoder_step.1} parent=1 // pred_fallthru
      _
    // Predicated region
    $region26: #{decoder_step.1} parent=1 // pred_check
      _
    $region27: #{decoder_step.1} parent=1 // pred_check_branch
      %65 = sbr.rel (0) target = $region29
    $region28: #{decoder_step.1} parent=1 // pred_region
      %67 = vsyncadd [#allocation9], 0
      %s69 = sshll.u32 %s6, 4
      %s70 = int_to_ptr.hbm [resolvable:$true] %s69
      %s71 = sshll.u32 [#allocation8], 4
      %s72 = int_to_ptr.vmem [resolvable:$true] %s71
      %74 = dma.hbm_to_vmem [thread:$0]  %s70, 128, %s72, [#allocation9]
    $region29: #{decoder_step.1} parent=1 // pred_fallthru
      _
    // Predicated region
    $region30: #{decoder_step.1} parent=1 // pred_check
      _
    $region31: #{decoder_step.1} parent=1 // pred_check_branch
      %76 = sbr.rel (0) target = $region33
    $region32: #{decoder_step.1} parent=1 // pred_region
      %78 = vsyncadd [#allocation9], 0
      %s79 = sshll.u32 %s7, 4
      %s80 = int_to_ptr.hbm [resolvable:$true] %s79
      %s81 = sshll.u32 [#allocation10], 4
      %s82 = int_to_ptr.vmem [resolvable:$true] %s81
      %87 = dma.hbm_to_vmem [thread:$0]  %s80, 256, %s82, [#allocation9], 64, 64, 4
    $region33: #{decoder_step.1} parent=1 // pred_fallthru
      _
    // Predicated region
    $region34: #{decoder_step.1} parent=1 // pred_check
      _
    $region35: #{decoder_step.1} parent=1 // pred_check_branch
      %89 = sbr.rel (0) target = $region37
    $region36: #{decoder_step.1} parent=1 // pred_region
      %91 = vsyncadd [#allocation12], 0
      %s93 = sshll.u32 %s8, 4
      %s94 = int_to_ptr.hbm [resolvable:$true] %s93
      %s95 = sshll.u32 [#allocation11], 4
      %s96 = int_to_ptr.vmem [resolvable:$true] %s95
      %98 = dma.hbm_to_vmem [thread:$0]  %s94, 128, %s96, [#allocation12]
    $region37: #{decoder_step.1} parent=1 // pred_fallthru
      _
    // Predicated region
    $region38: #{decoder_step.1} parent=1 // pred_check
      _
    $region39: #{decoder_step.1} parent=1 // pred_check_branch
      %100 = sbr.rel (0) target = $region41
    $region40: #{decoder_step.1} parent=1 // pred_region
      %102 = dma.done [#allocation3], 512
    $region41: #{decoder_step.1} parent=1 // pred_fallthru
      _
    // Predicated region
    $region42: #{decoder_step.1} parent=1 // pred_check
      _
    $region43: #{decoder_step.1} parent=1 // pred_check_branch
      %104 = sbr.rel (0) target = $region45
    $region44: #{decoder_step.1} parent=1 // pred_region
      %106 = dma.done [#allocation6], 128
    $region45: #{decoder_step.1} parent=1 // pred_fallthru
      _
    // Predicated region
    $region46: #{decoder_step.1} parent=1 // pred_check
      _
    $region47: #{decoder_step.1} parent=1 // pred_check_branch
      %108 = sbr.rel (0) target = $region49
    $region48: #{decoder_step.1} parent=1 // pred_region
      %110 = dma.done [#allocation6], 512
    $region49: #{decoder_step.1} parent=1 // pred_fallthru
      _
    // Predicated region
    $region50: #{decoder_step.1} parent=1 // pred_check
      _
    $region51: #{decoder_step.1} parent=1 // pred_check_branch
      %112 = sbr.rel (0) target = $region53
    $region52: #{decoder_step.1} parent=1 // pred_region
      %114 = dma.done [#allocation9], 128
    $region53: #{decoder_step.1} parent=1 // pred_fallthru
      _
    // Predicated region
    $region54: #{decoder_step.1} parent=1 // pred_check
      _
    $region55: #{decoder_step.1} parent=1 // pred_check_branch
      %116 = sbr.rel (0) target = $region57
    $region56: #{decoder_step.1} parent=1 // pred_region
      %118 = dma.done [#allocation9], 256
    $region57: #{decoder_step.1} parent=1 // pred_fallthru
      _
    // Predicated region
    $region58: #{decoder_step.1} parent=1 // pred_check
      _
    $region59: #{decoder_step.1} parent=1 // pred_check_branch
      %120 = sbr.rel (0) target = $region61
    $region60: #{decoder_step.1} parent=1 // pred_region
      %122 = dma.done [#allocation12], 128
    $region61: #{decoder_step.1} parent=1 // pred_fallthru
      _
    %v124 = vld [vmem:[%s0] sm:$0xff]
    %v125 = vld [vmem:[%s1] sm:$0xff]
    %v126 = vlaneseq
    %v127 = vand.u32 %v126, 127
    %128 = vset.pattern.permute.xlu0 0
    %129 = vperm.xlu0 %128, %v124
    %v130 = vpop.permute.xlu0 %129
    %vm131 = vcmp.eq.s32.totalorder %v127, %v130
    %v132 = vsel %vm131, 1, 0
    %v133 = vcvt.s32.f32 %v132
    %v134 = vpack.c.bf16 %v133, %v133
    %v135 = vld [vmem:[%s2] sm:$0xf]
    %v136 = vld [vmem:[%s2 + $0x4] sm:$0xf]
    %v137 = vld [vmem:[%s2 + $0x8] sm:$0xf]
    %v138 = vld [vmem:[%s2 + $0xc] sm:$0xf]
    %v143 = vunpack.c.l.b16 %v135
    %v144 = vunpack.c.l.b16 %v136
    %v145 = vunpack.c.l.b16 %v137
    %v146 = vunpack.c.l.b16 %v138
    %v147 = vpack.c.b16 %v144, %v143
    %v148 = vpack.c.b16 %v146, %v145
    %vm151 = vcmask 261120
    %v153 = vsel %vm151, %v134, 0
    %155 = vmatpush.bf16.msra.mxu0 0
    %156 = vmatpush.bf16.msra.mxu0 0
    %157 = vmatpush.bf16.msra.mxu0 0
    %158 = vmatpush.bf16.msra.mxu0 0
    %159 = vmatpush.bf16.msra.mxu0 0
    %160 = vmatpush.bf16.msra.mxu0 0
    %161 = vmatpush.bf16.msra.mxu0 %v148
    %162 = vmatpush.bf16.msra.mxu0 %v147
    %163 = vmatmul.bf16.gmra.mxu0 %v153
    %v164 = vpop.f32.mrf.mxu0
    %v165 = vadd.f32 0.0, %v164
    %v166 = vpop.f32.mrf.mxu0
    %167 = vdwg.mxu0
    %169 = vrot.lane.b32.xlu0 %v125, 32
    %v170 = vpop.permute.xlu0 %169
    %v172 = vsel %vm151, %v165, %v170
    %v173 = vpack.c.bf16 %v172, %v172
    %v174 = vld [vmem:[#allocation2] sm:$0xf]
    %v175 = vld [vmem:[#allocation2 + $0x4] sm:$0xf]
    %v176 = vld [vmem:[#allocation2 + $0x8] sm:$0xf]
    %v177 = vld [vmem:[#allocation2 + $0xc] sm:$0xf]
    %v178 = vld [vmem:[#allocation2 + $0x10] sm:$0xf]
    %v179 = vld [vmem:[#allocation2 + $0x14] sm:$0xf]
    %v180 = vld [vmem:[#allocation2 + $0x18] sm:$0xf]
    %v181 = vld [vmem:[#allocation2 + $0x1c] sm:$0xf]
    %v182 = vld [vmem:[#allocation5] sm:$0xff]
    %v191 = vunpack.c.l.b16 %v174
    %v192 = vunpack.c.l.b16 %v175
    %v193 = vunpack.c.l.b16 %v176
    %v194 = vunpack.c.l.b16 %v177
    %v195 = vunpack.c.l.b16 %v178
    %v196 = vunpack.c.l.b16 %v179
    %v197 = vunpack.c.l.b16 %v180
    %v198 = vunpack.c.l.b16 %v181
    %v199 = vpack.c.b16 %v192, %v191
    %v200 = vpack.c.b16 %v194, %v193
    %v201 = vpack.c.b16 %v196, %v195
    %v202 = vpack.c.b16 %v198, %v197
    %vm207 = vcmask 523264
    %v209 = vsel %vm207, %v173, 0
    %211 = vmatpush.bf16.msra.mxu0 0
    %212 = vmatpush.bf16.msra.mxu0 0
    %213 = vmatpush.bf16.msra.mxu0 0
    %214 = vmatpush.bf16.msra.mxu0 0
    %215 = vmatpush.bf16.msra.mxu0 %v202
    %216 = vmatpush.bf16.msra.mxu0 %v201
    %217 = vmatpush.bf16.msra.mxu0 %v200
    %218 = vmatpush.bf16.msra.mxu0 %v199
    %219 = vmatmul.bf16.gmra.mxu0 %v209
    %v220 = vpop.f32.mrf.mxu0
    %v221 = vadd.f32 %v182, %v220
    %v222 = vpop.f32.mrf.mxu0
    %223 = vdwg.mxu0
    %v224 = vxor.u32 %v221, 2147483648
    %v225 = vmul.f32 %v224, 1.442695
    %v226 = vpow.pop %v225
    %v227 = vadd.f32 %v226, 1.0
    %v228 = vrcp.pop %v227
    %v229 = vmul.f32 %v227, %v228
    %v230 = vsub.f32 1.0, %v229
    %v231 = vmul.f32 %v228, %v230
    %v232 = vadd.f32 %v228, %v231
    %vm233 = vweird.f32 %v227
    %vm234 = vweird.f32 %v228
    %vm235 = vmor %vm233, %vm234
    %v236 = vsel %vm235, %v228, %v232
    %v237 = vand.u32 2147483647, %v227
    %vm238 = vcmp.eq.f32.partialorder %v237, 8.507059e+37
    %v239 = vand.u32 %v227, 2147483648
    %v240 = vor.u32 1.1754944e-38, %v239
    %v241 = vsel %vm238, %v240, %v236
    %v242 = vmul.f32 1.0, %v241
    %v243 = vtanh.pop %v221
    %v244 = vmul.f32 %v242, %v125
    %246 = vrot.lane.b32.xlu0 %v243, 64
    %v247 = vpop.permute.xlu0 %246
    %v249 = vmul.f32 %v242, %v247
    %251 = vrot.lane.b32.xlu0 %v249, 32
    %v252 = vpop.permute.xlu0 %251
    %v254 = vadd.f32 %v244, %v252
    %v255 = vtanh.pop %v254
    %257 = vrot.lane.b32.xlu0 %v255, 64
    %v258 = vpop.permute.xlu0 %257
    %v260 = vmul.f32 %v242, %v258
    %262 = vrot.lane.b32.xlu0 %v260, 32
    %v263 = vpop.permute.xlu0 %262
    %265 = vrot.lane.b32.xlu0 %v125, 96
    %v266 = vpop.permute.xlu0 %265
    %v268 = vsel %vm151, %v263, %v266
    %v269 = vpack.c.bf16 %v268, %v268
    %v270 = vld [vmem:[#allocation7] sm:$0xf]
    %v271 = vld [vmem:[#allocation7 + $0x4] sm:$0xf]
    %v272 = vld [vmem:[#allocation7 + $0x8] sm:$0xf]
    %v273 = vld [vmem:[#allocation7 + $0xc] sm:$0xf]
    %v274 = vld [vmem:[#allocation7 + $0x10] sm:$0xf]
    %v275 = vld [vmem:[#allocation7 + $0x14] sm:$0xf]
    %v276 = vld [vmem:[#allocation7 + $0x18] sm:$0xf]
    %v277 = vld [vmem:[#allocation7 + $0x1c] sm:$0xf]
    %v278 = vld [vmem:[#allocation8] sm:$0xff]
    %v287 = vunpack.c.l.b16 %v270
    %v288 = vunpack.c.l.b16 %v271
    %v289 = vunpack.c.l.b16 %v272
    %v290 = vunpack.c.l.b16 %v273
    %v291 = vunpack.c.l.b16 %v274
    %v292 = vunpack.c.l.b16 %v275
    %v293 = vunpack.c.l.b16 %v276
    %v294 = vunpack.c.l.b16 %v277
    %v295 = vpack.c.b16 %v288, %v287
    %v296 = vpack.c.b16 %v290, %v289
    %v297 = vpack.c.b16 %v292, %v291
    %v298 = vpack.c.b16 %v294, %v293
    %v304 = vsel %vm207, %v269, 0
    %306 = vmatpush.bf16.msra.mxu0 0
    %307 = vmatpush.bf16.msra.mxu0 0
    %308 = vmatpush.bf16.msra.mxu0 0
    %309 = vmatpush.bf16.msra.mxu0 0
    %310 = vmatpush.bf16.msra.mxu0 %v298
    %311 = vmatpush.bf16.msra.mxu0 %v297
    %312 = vmatpush.bf16.msra.mxu0 %v296
    %313 = vmatpush.bf16.msra.mxu0 %v295
    %314 = vmatmul.bf16.gmra.mxu0 %v304
    %v315 = vpop.f32.mrf.mxu0
    %v316 = vadd.f32 %v278, %v315
    %v317 = vpop.f32.mrf.mxu0
    %318 = vdwg.mxu0
    %v319 = vxor.u32 %v316, 2147483648
    %v320 = vmul.f32 %v319, 1.442695
    %v321 = vpow.pop %v320
    %v322 = vadd.f32 %v321, 1.0
    %v323 = vrcp.pop %v322
    %v324 = vmul.f32 %v322, %v323
    %v325 = vsub.f32 1.0, %v324
    %v326 = vmul.f32 %v323, %v325
    %v327 = vadd.f32 %v323, %v326
    %vm328 = vweird.f32 %v322
    %vm329 = vweird.f32 %v323
    %vm330 = vmor %vm328, %vm329
    %v331 = vsel %vm330, %v323, %v327
    %v332 = vand.u32 2147483647, %v322
    %vm333 = vcmp.eq.f32.partialorder %v332, 8.507059e+37
    %v334 = vand.u32 %v322, 2147483648
    %v335 = vor.u32 1.1754944e-38, %v334
    %v336 = vsel %vm333, %v335, %v331
    %v337 = vmul.f32 1.0, %v336
    %v338 = vtanh.pop %v316
    %339 = vrot.lane.b32.xlu0 %v125, 64
    %v340 = vpop.permute.xlu0 %339
    %v342 = vmul.f32 %v337, %v340
    %344 = vrot.lane.b32.xlu0 %v338, 64
    %v345 = vpop.permute.xlu0 %344
    %v347 = vmul.f32 %v337, %v345
    %349 = vrot.lane.b32.xlu0 %v347, 32
    %v350 = vpop.permute.xlu0 %349
    %v352 = vadd.f32 %v342, %v350
    %v353 = vtanh.pop %v352
    %355 = vrot.lane.b32.xlu0 %v353, 64
    %v356 = vpop.permute.xlu0 %355
    %v358 = vmul.f32 %v337, %v356
    %360 = vrot.lane.b32.xlu0 %v358, 96
    %v361 = vpop.permute.xlu0 %360
    %364 = vrot.lane.b32.xlu0 %v352, 64
    %v365 = vpop.permute.xlu0 %364
    %v367 = vsel %vm151, %v263, %v254
    %v368 = vsel %vm207, %v367, %v361
    %vm369 = vcmask 785408
    %v370 = vsel %vm369, %v368, %v365
    %v371 = vpack.c.bf16 %v358, %v358
    %v372 = vld [vmem:[#allocation10] sm:$0xf]
    %v373 = vld [vmem:[#allocation10 + $0x4] sm:$0xf]
    %v374 = vld [vmem:[#allocation10 + $0x8] sm:$0xf]
    %v375 = vld [vmem:[#allocation10 + $0xc] sm:$0xf]
    %v376 = vld [vmem:[#allocation11] sm:$0xff]
    %378 = vrot.lane.b32.xlu0 %v371, 32
    %v379 = vpop.permute.xlu0 %378
    %v384 = vunpack.c.l.b16 %v372
    %v385 = vunpack.c.l.b16 %v373
    %v386 = vunpack.c.l.b16 %v374
    %v387 = vunpack.c.l.b16 %v375
    %v388 = vpack.c.b16 %v385, %v384
    %v389 = vpack.c.b16 %v387, %v386
    %v393 = vsel %vm151, %v379, 0
    %395 = vmatpush.bf16.msra.mxu0 0
    %396 = vmatpush.bf16.msra.mxu0 0
    %397 = vmatpush.bf16.msra.mxu0 0
    %398 = vmatpush.bf16.msra.mxu0 0
    %399 = vmatpush.bf16.msra.mxu0 0
    %400 = vmatpush.bf16.msra.mxu0 0
    %401 = vmatpush.bf16.msra.mxu0 %v389
    %402 = vmatpush.bf16.msra.mxu0 %v388
    %403 = vmatmul.bf16.gmra.mxu0 %v393
    %v404 = vpop.f32.mrf.mxu0
    %v405 = vadd.f32 %v376, %v404
    %v406 = vpop.f32.mrf.mxu0
    %407 = vdwg.mxu0
    %408 = vst [vmem:[%s10] sm:$0xff] %v370
    %409 = vst [vmem:[#allocation13] sm:$0xff] %v405
    // Predicated region
    $region62: #{decoder_step.1} parent=1 // pred_check
      _
    $region63: #{decoder_step.1} parent=1 // pred_check_branch
      %411 = sbr.rel (0) target = $region65
    $region64: #{decoder_step.1} parent=1 // pred_region
      %413 = vsyncadd [#allocation4], 0
      %s415 = sshll.u32 [#allocation13], 4
      %s416 = int_to_ptr.vmem [resolvable:$true] %s415
      %s417 = sshll.u32 %s9, 4
      %s418 = int_to_ptr.hbm [resolvable:$true] %s417
      %420 = dma.vmem_to_hbm [thread:$0]  %s416, 128, %s418, [#allocation4]
    $region65: #{decoder_step.1} parent=1 // pred_fallthru
      _
    // Predicated region
    $region66: #{decoder_step.1} parent=1 // pred_check
      _
    $region67: #{decoder_step.1} parent=1 // pred_check_branch
      %422 = sbr.rel (0) target = $region69
    $region68: #{decoder_step.1} parent=1 // pred_region
      _
    $region69: #{decoder_step.1} parent=1 // pred_fallthru
      _
    // Predicated region
    $region70: #{decoder_step.1} parent=1 // pred_check
      _
    $region71: #{decoder_step.1} parent=1 // pred_check_branch
      %424 = sbr.rel (0) target = $region73
    $region72: #{decoder_step.1} parent=1 // pred_region
      %426 = dma.done [#allocation4], 128
    $region73: #{decoder_step.1} parent=1 // pred_fallthru
      _
    // Predicated region
    $region74: #{decoder_step.1} parent=1 // pred_check
      _
    $region75: #{decoder_step.1} parent=1 // pred_check_branch
      %428 = sbr.rel (0) target = $region77
    $region76: #{decoder_step.1} parent=1 // pred_region
      _
    $region77: #{decoder_step.1} parent=1 // pred_fallthru
      _
    %429 = vsyncpa [#allocation3], 1
    %430 = vsyncpa [#allocation6], 1
    %431 = vsyncpa [#allocation9], 1
    %432 = vsyncpa [#allocation12], 1
    %433 = vsyncpa [#allocation4], 1

</llo_original>
